<compile_context>
chip_gen: v7x
topology: tpu7x:2x2x1
jax: 0.10.0
libtpu: 0.0.40
codegen_flags: <defaults>
</compile_context>

<pallas_src>
import jax
import jax.numpy as jnp
import numpy as np
from jax import lax
from jax.experimental import pallas as pl
from jax.experimental.pallas import tpu as pltpu


def embedding_layer_kernel(ids_ref,   # SMEM (N,) int32   (scalar prefetch)
                           e_ref,     # VMEM (V, H) f32   (whole table, BlockSpec-prefetched)
                           m_ref,     # VMEM (H, H) f32
                           emb_ref,   # VMEM out (N, H) f32
                           w_ref):    # VMEM out (N, 1) f32
    n, h = emb_ref.shape

    # ---- On-chip gather: dynamic row reads from the VMEM-resident table,
    # written straight into the output block (exact copies, no scratch).
    for i in range(n):                               # n is a static Python int
        row = ids_ref[i]                             # scalar read from SMEM
        emb_ref[pl.ds(i, 1), :] = e_ref[pl.ds(row, 1), :]

    emb = emb_ref[...]                               # (N, H) f32

    # ys = mean over the sequence axis (multiply by constant 1/N, no divide).
    ys = jnp.sum(emb, axis=0, keepdims=True) * (1.0 / n)          # (1, H)

    # t[0, j] = sum_k M[j, k] * ys[0, k]   (== (M @ ys^T)^T)      -> (1, H)
    t = lax.dot_general(ys, m_ref[...],
                        dimension_numbers=(((1,), (1,)), ((), ())),
                        preferred_element_type=jnp.float32)

    # w[i] = sum_j emb[i, j] * t[0, j]  -- VPU broadcast-multiply + lane reduce
    # (avoids a second MXU matmul whose M-dim would be 1).
    w_ref[...] = jnp.sum(emb * t, axis=1, keepdims=True)          # (N, 1)


def embedding_layer(ids, e_table, m):
    """ids: (N,) int token indices; e_table: (V, H) f32; m: (H, H) f32."""
    n = ids.shape[0]
    v, h = e_table.shape

    # Clamp ids so an out-of-range token can never index outside the table.
    ids_i32 = jnp.clip(ids.astype(jnp.int32), 0, v - 1)

    emb, w = pl.pallas_call(
        embedding_layer_kernel,
        out_shape=(jax.ShapeDtypeStruct((n, h), jnp.float32),
                   jax.ShapeDtypeStruct((n, 1), jnp.float32)),
        grid_spec=pltpu.PrefetchScalarGridSpec(
            num_scalar_prefetch=1,                   # ids -> SMEM
            grid=(1,),
            in_specs=[
                pl.BlockSpec((v, h), lambda i, ids: (0, 0)),   # whole table in VMEM
                pl.BlockSpec((h, h), lambda i, ids: (0, 0)),   # M in VMEM
            ],
            out_specs=(
                pl.BlockSpec((n, h), lambda i, ids: (0, 0)),   # embeddings
                pl.BlockSpec((n, 1), lambda i, ids: (0, 0)),   # weights column
            ),
        ),
        compiler_params=pltpu.CompilerParams(
            dimension_semantics=("arbitrary",)),
    )(ids_i32, e_table, m)
    return emb, w.reshape(n)


if __name__ == "__main__":
    # Small, TPU-friendly shapes consistent with the module's forward.
    input_size = 64    # vocabulary size (V)
    hidden_size = 128  # embedding width (H)
    seq_len = 8        # input_tensor.shape[0] (N)

    key = jax.random.PRNGKey(0)
    k_emb, k_m, k_ids = jax.random.split(key, 3)

    # Deterministic parameter init (nn.Embedding ~ N(0,1); M ~ randn).
    e_table = jax.random.normal(k_emb, (input_size, hidden_size), jnp.float32)
    m = jax.random.normal(k_m, (hidden_size, hidden_size), jnp.float32)
    input_tensor = jax.random.randint(k_ids, (seq_len,), 0, input_size, jnp.int32)

    emb_out, w_out = embedding_layer(input_tensor, e_table, m)
    jax.block_until_ready((emb_out, w_out))

    # Precision-unambiguous float64 numpy reference of the PyTorch forward.
    e_np = np.asarray(e_table, dtype=np.float64)
    m_np = np.asarray(m, dtype=np.float64)
    ids_np = np.asarray(input_tensor)
    emb_np = e_np[ids_np]                                   # (N, H)
    ys_np = emb_np.mean(axis=0, keepdims=True)              # (1, H)
    w_np = (emb_np @ m_np @ ys_np.T).reshape(-1)            # (N,)

    assert emb_out.shape == (seq_len, hidden_size)
    assert w_out.shape == (seq_len,)
    assert np.allclose(np.asarray(emb_out, np.float64), emb_np, atol=1e-6, rtol=1e-6)
    assert np.allclose(np.asarray(w_out, np.float64), w_np, atol=5e-3, rtol=5e-3)

    print("KERNEL_OK")
</pallas_src>

<mosaic_0001>
module attributes {stable_mosaic.version = 11 : i64} {
  func.func @embedding_layer_kernel(%arg0: i32, %arg1: memref<8xi32, #tpu.memory_space<smem>>, %arg2: memref<64x128xf32, #tpu.memory_space<vmem>>, %arg3: memref<128x128xf32, #tpu.memory_space<vmem>>, %arg4: memref<8x128xf32, #tpu.memory_space<vmem>>, %arg5: memref<8x1xf32, #tpu.memory_space<vmem>>) attributes {dimension_semantics = [#tpu.dimension_semantics<arbitrary>], iteration_bounds = array<i64: 1>, scalar_prefetch = 1 : i64, scratch_operands = 0 : i64, tpu.core_type = #tpu.core_type<tc>, window_params = [{pipeline_mode = #tpu.pipeline_mode<synchronous>, transform_indices = @transform_0, window_bounds = array<i64: 64, 128>}, {pipeline_mode = #tpu.pipeline_mode<synchronous>, transform_indices = @transform_1, window_bounds = array<i64: 128, 128>}, {pipeline_mode = #tpu.pipeline_mode<synchronous>, transform_indices = @transform_2, window_bounds = array<i64: 8, 128>}, {pipeline_mode = #tpu.pipeline_mode<synchronous>, transform_indices = @transform_3, window_bounds = array<i64: 8, 1>}]} {
    %c0 = arith.constant 0 : index
    %0 = memref.load %arg1[%c0] : memref<8xi32, #tpu.memory_space<smem>>
    %1 = arith.index_cast %0 : i32 to index
    %c0_0 = arith.constant 0 : index
    %2 = vector.load %arg2[%1, %c0_0] : memref<64x128xf32, #tpu.memory_space<vmem>>, vector<1x128xf32>
    %c0_1 = arith.constant 0 : index
    %c0_2 = arith.constant 0 : index
    %3 = vector.load %arg4[%c0_1, %c0_2] : memref<8x128xf32, #tpu.memory_space<vmem>>, vector<1x128xf32>
    tpu.vector_store %arg4[%c0_1, %c0_2], %2 {strides = array<i32>} : memref<8x128xf32, #tpu.memory_space<vmem>>, vector<1x128xf32>,
    %c1 = arith.constant 1 : index
    %4 = memref.load %arg1[%c1] : memref<8xi32, #tpu.memory_space<smem>>
    %5 = arith.index_cast %4 : i32 to index
    %c0_3 = arith.constant 0 : index
    %6 = vector.load %arg2[%5, %c0_3] : memref<64x128xf32, #tpu.memory_space<vmem>>, vector<1x128xf32>
    %c1_4 = arith.constant 1 : index
    %c0_5 = arith.constant 0 : index
    %7 = vector.load %arg4[%c1_4, %c0_5] : memref<8x128xf32, #tpu.memory_space<vmem>>, vector<1x128xf32>
    tpu.vector_store %arg4[%c1_4, %c0_5], %6 {strides = array<i32>} : memref<8x128xf32, #tpu.memory_space<vmem>>, vector<1x128xf32>,
    %c2 = arith.constant 2 : index
    %8 = memref.load %arg1[%c2] : memref<8xi32, #tpu.memory_space<smem>>
    %9 = arith.index_cast %8 : i32 to index
    %c0_6 = arith.constant 0 : index
    %10 = vector.load %arg2[%9, %c0_6] : memref<64x128xf32, #tpu.memory_space<vmem>>, vector<1x128xf32>
    %c2_7 = arith.constant 2 : index
    %c0_8 = arith.constant 0 : index
    %11 = vector.load %arg4[%c2_7, %c0_8] : memref<8x128xf32, #tpu.memory_space<vmem>>, vector<1x128xf32>
    tpu.vector_store %arg4[%c2_7, %c0_8], %10 {strides = array<i32>} : memref<8x128xf32, #tpu.memory_space<vmem>>, vector<1x128xf32>,
    %c3 = arith.constant 3 : index
    %12 = memref.load %arg1[%c3] : memref<8xi32, #tpu.memory_space<smem>>
    %13 = arith.index_cast %12 : i32 to index
    %c0_9 = arith.constant 0 : index
    %14 = vector.load %arg2[%13, %c0_9] : memref<64x128xf32, #tpu.memory_space<vmem>>, vector<1x128xf32>
    %c3_10 = arith.constant 3 : index
    %c0_11 = arith.constant 0 : index
    %15 = vector.load %arg4[%c3_10, %c0_11] : memref<8x128xf32, #tpu.memory_space<vmem>>, vector<1x128xf32>
    tpu.vector_store %arg4[%c3_10, %c0_11], %14 {strides = array<i32>} : memref<8x128xf32, #tpu.memory_space<vmem>>, vector<1x128xf32>,
    %c4 = arith.constant 4 : index
    %16 = memref.load %arg1[%c4] : memref<8xi32, #tpu.memory_space<smem>>
    %17 = arith.index_cast %16 : i32 to index
    %c0_12 = arith.constant 0 : index
    %18 = vector.load %arg2[%17, %c0_12] : memref<64x128xf32, #tpu.memory_space<vmem>>, vector<1x128xf32>
    %c4_13 = arith.constant 4 : index
    %c0_14 = arith.constant 0 : index
    %19 = vector.load %arg4[%c4_13, %c0_14] : memref<8x128xf32, #tpu.memory_space<vmem>>, vector<1x128xf32>
    tpu.vector_store %arg4[%c4_13, %c0_14], %18 {strides = array<i32>} : memref<8x128xf32, #tpu.memory_space<vmem>>, vector<1x128xf32>,
    %c5 = arith.constant 5 : index
    %20 = memref.load %arg1[%c5] : memref<8xi32, #tpu.memory_space<smem>>
    %21 = arith.index_cast %20 : i32 to index
    %c0_15 = arith.constant 0 : index
    %22 = vector.load %arg2[%21, %c0_15] : memref<64x128xf32, #tpu.memory_space<vmem>>, vector<1x128xf32>
    %c5_16 = arith.constant 5 : index
    %c0_17 = arith.constant 0 : index
    %23 = vector.load %arg4[%c5_16, %c0_17] : memref<8x128xf32, #tpu.memory_space<vmem>>, vector<1x128xf32>
    tpu.vector_store %arg4[%c5_16, %c0_17], %22 {strides = array<i32>} : memref<8x128xf32, #tpu.memory_space<vmem>>, vector<1x128xf32>,
    %c6 = arith.constant 6 : index
    %24 = memref.load %arg1[%c6] : memref<8xi32, #tpu.memory_space<smem>>
    %25 = arith.index_cast %24 : i32 to index
    %c0_18 = arith.constant 0 : index
    %26 = vector.load %arg2[%25, %c0_18] : memref<64x128xf32, #tpu.memory_space<vmem>>, vector<1x128xf32>
    %c6_19 = arith.constant 6 : index
    %c0_20 = arith.constant 0 : index
    %27 = vector.load %arg4[%c6_19, %c0_20] : memref<8x128xf32, #tpu.memory_space<vmem>>, vector<1x128xf32>
    tpu.vector_store %arg4[%c6_19, %c0_20], %26 {strides = array<i32>} : memref<8x128xf32, #tpu.memory_space<vmem>>, vector<1x128xf32>,
    %c7 = arith.constant 7 : index
    %28 = memref.load %arg1[%c7] : memref<8xi32, #tpu.memory_space<smem>>
    %29 = arith.index_cast %28 : i32 to index
    %c0_21 = arith.constant 0 : index
    %30 = vector.load %arg2[%29, %c0_21] : memref<64x128xf32, #tpu.memory_space<vmem>>, vector<1x128xf32>
    %c7_22 = arith.constant 7 : index
    %c0_23 = arith.constant 0 : index
    %31 = vector.load %arg4[%c7_22, %c0_23] : memref<8x128xf32, #tpu.memory_space<vmem>>, vector<1x128xf32>
    tpu.vector_store %arg4[%c7_22, %c0_23], %30 {strides = array<i32>} : memref<8x128xf32, #tpu.memory_space<vmem>>, vector<1x128xf32>,
    %c0_24 = arith.constant 0 : index
    %c0_25 = arith.constant 0 : index
    %32 = vector.load %arg4[%c0_24, %c0_25] : memref<8x128xf32, #tpu.memory_space<vmem>>, vector<8x128xf32>
    %cst = arith.constant dense<0.000000e+00> : vector<128xf32>
    %33 = vector.multi_reduction <add>, %32, %cst [0] : vector<8x128xf32> to vector<128xf32>
    %34 = vector.shape_cast %33 : vector<128xf32> to vector<1x128xf32>
    %cst_26 = arith.constant 1.250000e-01 : f32
    %35 = vector.broadcast %cst_26 : f32 to vector<1x128xf32>
    %36 = arith.mulf %34, %35 : vector<1x128xf32>
    %c0_27 = arith.constant 0 : index
    %c0_28 = arith.constant 0 : index
    %37 = vector.load %arg3[%c0_27, %c0_28] : memref<128x128xf32, #tpu.memory_space<vmem>>, vector<128x128xf32>
    %cst_29 = arith.constant dense<0.000000e+00> : vector<1x128xf32>
    %38 = tpu.matmul %36, %37, %cst_29 {dimension_numbers = #tpu.dot_dimension_numbers<[1], [1], [0], [0], [0, 0, 1, 0], [], []>} : vector<1x128xf32>, vector<128x128xf32>, vector<1x128xf32> -> vector<1x128xf32>
    %39 = vector.broadcast %38 : vector<1x128xf32> to vector<8x128xf32>
    %40 = arith.mulf %32, %39 : vector<8x128xf32>
    %cst_30 = arith.constant dense<0.000000e+00> : vector<8xf32>
    %41 = vector.multi_reduction <add>, %40, %cst_30 [1] : vector<8x128xf32> to vector<8xf32>
    %42 = vector.shape_cast %41 : vector<8xf32> to vector<8x1xf32>
    %c0_31 = arith.constant 0 : index
    %c0_32 = arith.constant 0 : index
    %43 = vector.load %arg5[%c0_31, %c0_32] : memref<8x1xf32, #tpu.memory_space<vmem>>, vector<8x1xf32>
    tpu.vector_store %arg5[%c0_31, %c0_32], %42 {strides = array<i32>} : memref<8x1xf32, #tpu.memory_space<vmem>>, vector<8x1xf32>,
    return
  }
  func.func @transform_0(%arg0: i32, %arg1: memref<8xi32, #tpu.memory_space<smem>>) -> (i32, i32) {
    %c0_i32 = arith.constant 0 : i32
    %c0_i32_0 = arith.constant 0 : i32
    %c0_i32_1 = arith.constant 0 : i32
    return %c0_i32, %c0_i32_0 : i32, i32
  }
  func.func @transform_1(%arg0: i32, %arg1: memref<8xi32, #tpu.memory_space<smem>>) -> (i32, i32) {
    %c0_i32 = arith.constant 0 : i32
    %c0_i32_0 = arith.constant 0 : i32
    %c0_i32_1 = arith.constant 0 : i32
    return %c0_i32, %c0_i32_0 : i32, i32
  }
  func.func @transform_2(%arg0: i32, %arg1: memref<8xi32, #tpu.memory_space<smem>>) -> (i32, i32) {
    %c0_i32 = arith.constant 0 : i32
    %c0_i32_0 = arith.constant 0 : i32
    %c0_i32_1 = arith.constant 0 : i32
    return %c0_i32, %c0_i32_0 : i32, i32
  }
  func.func @transform_3(%arg0: i32, %arg1: memref<8xi32, #tpu.memory_space<smem>>) -> (i32, i32) {
    %c0_i32 = arith.constant 0 : i32
    %c0_i32_0 = arith.constant 0 : i32
    %c0_i32_1 = arith.constant 0 : i32
    return %c0_i32, %c0_i32_0 : i32, i32
  }
}

</mosaic_0001>

<llo_original>
// kernel: tpu_custom_call.1
$region0: #{tpu_custom_call.1}
  #allocation0 [shape = 'u32[]', space=smem, size = 0x4, offset = 0x4, fixed_abs, tag = 'smem constant byte address 0x4 - core index']
  #allocation1 [shape = 'u32[144,128]{1,0:T(1,128)}', space=vmem, size = 0x12000, scoped, tag = 'internal scratch']
  #allocation2 [shape = 's32[1]{0}', space=sflag, size = 0x4, scoped, tag = 'scoped memory for tpu_custom_call.1']
  #allocation3 [shape = 'u8[512]{0}', space=smem, size = 0x200, scoped, tag = 'prefetched SMEM operand 0']
  %s0 = inlined_call_operand.hbm [shape: s32[8], index: 0, kind: input, shape index: {}]
  %s1 = inlined_call_operand.hbm [shape: f32[64,128], index: 1, kind: input, shape index: {}]
  %s2 = inlined_call_operand.hbm [shape: f32[128,128], index: 2, kind: input, shape index: {}]
  %s3 = inlined_call_operand.hbm [shape: f32[8,128], index: 3, kind: output, shape index: {0}]
  %s4 = inlined_call_operand.vmem [shape: f32[8,1], index: 4, kind: output, shape index: {1}]
  %5 = xla_tuple %s3, %s4
  %s6 = sld [smem:[#allocation0]]
  $region34: #{tpu_custom_call.1} parent=0
    _
  %s8 = ssub.s32 1, %s6
  %s9 = scalar_select 0, %s8, %s6
  %11 = dma.hbm_to_smem %s0, 16, [#allocation3], [#allocation2]
  %12 = dma.done [#allocation2], 16
  %13 = sfence
  $region1: #{tpu_custom_call.1} parent=0
    #allocation4 [shape = 'u8[32768]{0}', space=vmem, size = 0x8000, scoped, tag = 'input window, operand 1, single buffered']
    #allocation5 [shape = 's32[1]{0}', space=sflag, size = 0x4, scoped, tag = 'scoped memory for tpu_custom_call.1']
    #allocation6 [shape = 's32[1]{0}', space=sflag, size = 0x4, scoped, tag = 'scoped memory for tpu_custom_call.1']
    #allocation7 [shape = 'u8[65536]{0}', space=vmem, size = 0x10000, scoped, tag = 'input window, operand 2, single buffered']
    #allocation8 [shape = 's32[1]{0}', space=sflag, size = 0x4, scoped, tag = 'scoped memory for tpu_custom_call.1']
    #allocation9 [shape = 'u8[4096]{0}', space=vmem, size = 0x1000, scoped, tag = 'output window, operand 0, single buffered']
    %14 = vsyncpa [#allocation5], 0
    %15 = vsyncpa [#allocation8], 0
    %16 = vsyncpa [#allocation6], 0
    // Predicated region
    $region2: #{tpu_custom_call.1} parent=1 // pred_check
      _
    $region3: #{tpu_custom_call.1} parent=1 // pred_check_branch
      %18 = sbr.rel (0) target = $region5
    $region4: #{tpu_custom_call.1} parent=1 // pred_region
      %s20 = ssub.s32 1024, 1024
      %21 = vsyncadd [#allocation5], %s20
      %s22 = sshll.u32 [#allocation4], 4
      %s23 = int_to_ptr.vmem [resolvable:$true] %s22
      %28 = dma.hbm_to_vmem [thread:$0]  %s1, 1024, %s23, [#allocation5], 128, 128, 8
    $region5: #{tpu_custom_call.1} parent=1 // pred_fallthru
      _
    // Predicated region
    $region6: #{tpu_custom_call.1} parent=1 // pred_check
      _
    $region7: #{tpu_custom_call.1} parent=1 // pred_check_branch
      %30 = sbr.rel (0) target = $region9
    $region8: #{tpu_custom_call.1} parent=1 // pred_region
      %s32 = ssub.s32 2048, 2048
      %33 = vsyncadd [#allocation8], %s32
      %s34 = sshll.u32 [#allocation7], 4
      %s35 = int_to_ptr.vmem [resolvable:$true] %s34
      %40 = dma.hbm_to_vmem [thread:$0]  %s2, 2048, %s35, [#allocation8], 128, 128, 8
    $region9: #{tpu_custom_call.1} parent=1 // pred_fallthru
      _
    // Predicated region
    $region10: #{tpu_custom_call.1} parent=1 // pred_check
      _
    $region11: #{tpu_custom_call.1} parent=1 // pred_check_branch
      %42 = sbr.rel (0) target = $region13
    $region12: #{tpu_custom_call.1} parent=1 // pred_region
      %43 = dma.done [#allocation5], 1024
    $region13: #{tpu_custom_call.1} parent=1 // pred_fallthru
      _
    // Predicated region
    $region14: #{tpu_custom_call.1} parent=1 // pred_check
      _
    $region15: #{tpu_custom_call.1} parent=1 // pred_check_branch
      %45 = sbr.rel (0) target = $region17
    $region16: #{tpu_custom_call.1} parent=1 // pred_region
      %46 = dma.done [#allocation8], 2048
    $region17: #{tpu_custom_call.1} parent=1 // pred_fallthru
      _
    %s47 = sld [smem:[#allocation3]]
    %s48 = scalar_lea.vmem [#allocation4], %s47
    %v49 = vld [vmem:[%s48] sm:$0x1]
    %50 = vst [vmem:[#allocation9] sm:$0x1] %v49
    %s51 = sld [smem:[#allocation3 + $0x1]]
    %s52 = scalar_lea.vmem [#allocation4], %s51
    %v53 = vld [vmem:[%s52] sm:$0x1]
    %54 = vst [vmem:[#allocation9 + $0x1] sm:$0x1] %v53
    %s55 = sld [smem:[#allocation3 + $0x2]]
    %s56 = scalar_lea.vmem [#allocation4], %s55
    %v57 = vld [vmem:[%s56] sm:$0x1]
    %58 = vst [vmem:[#allocation9 + $0x2] sm:$0x1] %v57
    %s59 = sld [smem:[#allocation3 + $0x3]]
    %s60 = scalar_lea.vmem [#allocation4], %s59
    %v61 = vld [vmem:[%s60] sm:$0x1]
    %62 = vst [vmem:[#allocation9 + $0x3] sm:$0x1] %v61
    %s63 = sld [smem:[#allocation3 + $0x4]]
    %s64 = scalar_lea.vmem [#allocation4], %s63
    %v65 = vld [vmem:[%s64] sm:$0x1]
    %66 = vst [vmem:[#allocation9 + $0x4] sm:$0x1] %v65
    %s67 = sld [smem:[#allocation3 + $0x5]]
    %s68 = scalar_lea.vmem [#allocation4], %s67
    %v69 = vld [vmem:[%s68] sm:$0x1]
    %70 = vst [vmem:[#allocation9 + $0x5] sm:$0x1] %v69
    %s71 = sld [smem:[#allocation3 + $0x6]]
    %s72 = scalar_lea.vmem [#allocation4], %s71
    %v73 = vld [vmem:[%s72] sm:$0x1]
    %74 = vst [vmem:[#allocation9 + $0x6] sm:$0x1] %v73
    %s75 = sld [smem:[#allocation3 + $0x7]]
    %s76 = scalar_lea.vmem [#allocation4], %s75
    %v77 = vld [vmem:[%s76] sm:$0x1]
    %78 = vst [vmem:[#allocation9 + $0x7] sm:$0x1] %v77
    %v79 = vld [vmem:[#allocation9] sm:$0xff]
    %v80 = vrot.slane %v79, 4
    %v81 = vadd.f32 %v79, %v80
    %v82 = vrot.slane %v81, 2
    %v83 = vadd.f32 %v81, %v82
    %v84 = vrot.slane %v83, 1
    %v85 = vadd.f32 %v83, %v84
    %v86 = vmul.f32 %v85, 0.125
    %v87 = vld [vmem:[#allocation7] sm:$0xff]
    %v88 = vld [vmem:[#allocation7 + $0x8] sm:$0xff]
    %v89 = vld [vmem:[#allocation7 + $0x10] sm:$0xff]
    %v90 = vld [vmem:[#allocation7 + $0x18] sm:$0xff]
    %v91 = vld [vmem:[#allocation7 + $0x20] sm:$0xff]
    %v92 = vld [vmem:[#allocation7 + $0x28] sm:$0xff]
    %v93 = vld [vmem:[#allocation7 + $0x30] sm:$0xff]
    %v94 = vld [vmem:[#allocation7 + $0x38] sm:$0xff]
    %v95 = vld [vmem:[#allocation7 + $0x40] sm:$0xff]
    %v96 = vld [vmem:[#allocation7 + $0x48] sm:$0xff]
    %v97 = vld [vmem:[#allocation7 + $0x50] sm:$0xff]
    %v98 = vld [vmem:[#allocation7 + $0x58] sm:$0xff]
    %v99 = vld [vmem:[#allocation7 + $0x60] sm:$0xff]
    %v100 = vld [vmem:[#allocation7 + $0x68] sm:$0xff]
    %v101 = vld [vmem:[#allocation7 + $0x70] sm:$0xff]
    %v102 = vld [vmem:[#allocation7 + $0x78] sm:$0xff]
    %103 = vmatprep.subr.mxu0 0.0
    %104 = vmatpush1.xpose.msra.mxu0 %v87
    %105 = vmatprep.subr.mxu0 0.0
    %106 = vmatpush1.xpose.msra.mxu0 %v88
    %107 = vmatprep.subr.mxu0 0.0
    %108 = vmatpush1.xpose.msra.mxu0 %v89
    %109 = vmatprep.subr.mxu0 0.0
    %110 = vmatpush1.xpose.msra.mxu0 %v90
    %111 = vmatprep.subr.mxu0 0.0
    %112 = vmatpush1.xpose.msra.mxu0 %v91
    %113 = vmatprep.subr.mxu0 0.0
    %114 = vmatpush1.xpose.msra.mxu0 %v92
    %115 = vmatprep.subr.mxu0 0.0
    %116 = vmatpush1.xpose.msra.mxu0 %v93
    %117 = vmatprep.subr.mxu0 0.0
    %118 = vmatpush1.xpose.msra.mxu0 %v94
    %119 = vmatprep.subr.mxu0 0.0
    %120 = vmatpush1.xpose.msra.mxu0 %v95
    %121 = vmatprep.subr.mxu0 0.0
    %122 = vmatpush1.xpose.msra.mxu0 %v96
    %123 = vmatprep.subr.mxu0 0.0
    %124 = vmatpush1.xpose.msra.mxu0 %v97
    %125 = vmatprep.subr.mxu0 0.0
    %126 = vmatpush1.xpose.msra.mxu0 %v98
    %127 = vmatprep.subr.mxu0 0.0
    %128 = vmatpush1.xpose.msra.mxu0 %v99
    %129 = vmatprep.subr.mxu0 0.0
    %130 = vmatpush1.xpose.msra.mxu0 %v100
    %131 = vmatprep.subr.mxu0 0.0
    %132 = vmatpush1.xpose.msra.mxu0 %v101
    %133 = vmatprep.subr.mxu0 0.0
    %134 = vmatpush1.xpose.msra.mxu0 %v102
    %135 = vmatprep.subr.mxu0 0.0
    %136 = vmatpush1.xpose.msra.mxu0 0.0
    %137 = vmatprep.subr.mxu0 0.0
    %138 = vmatpush1.xpose.msra.mxu0 0.0
    %139 = vmatprep.subr.mxu0 0.0
    %140 = vmatpush1.xpose.msra.mxu0 0.0
    %141 = vmatprep.subr.mxu0 0.0
    %142 = vmatpush1.xpose.msra.mxu0 0.0
    %143 = vmatprep.subr.mxu0 0.0
    %144 = vmatpush1.xpose.msra.mxu0 0.0
    %145 = vmatprep.subr.mxu0 0.0
    %146 = vmatpush1.xpose.msra.mxu0 0.0
    %147 = vmatprep.subr.mxu0 0.0
    %148 = vmatpush1.xpose.msra.mxu0 0.0
    %149 = vmatprep.subr.mxu0 0.0
    %150 = vmatpush1.xpose.msra.mxu0 0.0
    %151 = vmatprep.subr.mxu0 0.0
    %152 = vmatpush1.xpose.msra.mxu0 0.0
    %153 = vmatprep.subr.mxu0 0.0
    %154 = vmatpush1.xpose.msra.mxu0 0.0
    %155 = vmatprep.subr.mxu0 0.0
    %156 = vmatpush1.xpose.msra.mxu0 0.0
    %157 = vmatprep.subr.mxu0 0.0
    %158 = vmatpush1.xpose.msra.mxu0 0.0
    %159 = vmatprep.subr.mxu0 0.0
    %160 = vmatpush1.xpose.msra.mxu0 0.0
    %161 = vmatprep.subr.mxu0 0.0
    %162 = vmatpush1.xpose.msra.mxu0 0.0
    %163 = vmatprep.subr.mxu0 0.0
    %164 = vmatpush1.xpose.msra.mxu0 0.0
    %165 = vmatprep.subr.mxu0 0.0
    %166 = vmatpush1.xpose.msra.mxu0 0.0
    %167 = vmatprep.mubr.f32.mxu0 0.0
    %168 = vmatmul.mubr.f32.gmra.mrb[0].mxu0 %v86
    %v169 = vpop.f32.mrb[0].mxu0
    %v170 = vadd.f32 0.0, %v169
    %v171 = vpop.f32.mrb[0].mxu0
    %172 = vdwg.mxu0
    %v173 = vlaneseq
    %v174 = vshrl.u32 %v173, 7
    %v175 = vsub.s32 0, %v174
    %v176 = vrot.slane %v170, %v175
    %v177 = vmul.f32 %v79, %v176
    %178 = vadd.xlane.f32.xlu0 %v177
    %v179 = vpop.xlane.xlu0 %178
    %vm180 = vcmask 7168
    %181 = vst.msk [vmem:[%s4] sm:$0xff] %vm180, %v179
    // Predicated region
    $region18: #{tpu_custom_call.1} parent=1 // pred_check
      _
    $region19: #{tpu_custom_call.1} parent=1 // pred_check_branch
      %183 = sbr.rel (0) target = $region21
    $region20: #{tpu_custom_call.1} parent=1 // pred_region
      %s185 = ssub.s32 128, 128
      %186 = vsyncadd [#allocation6], %s185
      %s188 = sshll.u32 [#allocation9], 4
      %s189 = int_to_ptr.vmem [resolvable:$true] %s188
      %191 = dma.vmem_to_hbm [thread:$0]  %s189, 128, %s3, [#allocation6]
    $region21: #{tpu_custom_call.1} parent=1 // pred_fallthru
      _
    // Predicated region
    $region22: #{tpu_custom_call.1} parent=1 // pred_check
      _
    $region23: #{tpu_custom_call.1} parent=1 // pred_check_branch
      %193 = sbr.rel (0) target = $region25
    $region24: #{tpu_custom_call.1} parent=1 // pred_region
      _
    $region25: #{tpu_custom_call.1} parent=1 // pred_fallthru
      _
    // Predicated region
    $region26: #{tpu_custom_call.1} parent=1 // pred_check
      _
    $region27: #{tpu_custom_call.1} parent=1 // pred_check_branch
      %195 = sbr.rel (0) target = $region29
    $region28: #{tpu_custom_call.1} parent=1 // pred_region
      %196 = dma.done [#allocation6], 128
    $region29: #{tpu_custom_call.1} parent=1 // pred_fallthru
      _
    // Predicated region
    $region30: #{tpu_custom_call.1} parent=1 // pred_check
      _
    $region31: #{tpu_custom_call.1} parent=1 // pred_check_branch
      %198 = sbr.rel (0) target = $region33
    $region32: #{tpu_custom_call.1} parent=1 // pred_region
      _
    $region33: #{tpu_custom_call.1} parent=1 // pred_fallthru
      _
    %199 = vsyncpa [#allocation5], 1
    %200 = vsyncpa [#allocation8], 1
    %201 = vsyncpa [#allocation6], 1

</llo_original>
